<compile_context>
chip_gen: v7x
topology: tpu7x:2x2x1
jax: 0.10.0
libtpu: 0.0.40
codegen_flags: <defaults>
</compile_context>

<pallas_src>
import jax
import jax.numpy as jnp
from jax.experimental import pallas as pl
from jax.experimental.pallas import tpu as pltpu


_EPS = 2e-12


def _round_up(n, m):
    return (n + m - 1) // m * m


def _sublane_pack(itemsize):
    # Sub-32-bit dtypes pack along sublanes: native second-minor tile is
    # 8 (f32) / 16 (bf16, f16) / 32 (int8, fp8) rows.
    return {4: 8, 2: 16, 1: 32}.get(itemsize, 8)


def _standard_norm_kernel(x_ref, o_ref):
    """Normalize over axis=1 (channels). Block is (1, C, T_HW) or (1, C, TR, 128)."""
    x = x_ref[...]
    xf = x if x.dtype == jnp.float32 else x.astype(jnp.float32)
    c = xf.shape[1]
    mean = jnp.mean(xf, axis=1, keepdims=True)
    # torch.Tensor.std defaults to the unbiased estimator (divisor C-1).
    # C == 1 -> scale = inf, var = 0 * inf = NaN, matching torch's NaN output.
    scale = jnp.float32(1.0 / (c - 1)) if c > 1 else jnp.float32(jnp.inf)
    var = jnp.sum(jnp.square(xf - mean), axis=1, keepdims=True) * scale
    # eps is added to std (outside the sqrt), as in the PyTorch module.
    # approx=False: approx reciprocal's ~2e-4 rel err would exceed the 1e-5
    # tolerance, and this op is nowhere near the critical path (HBM-bound).
    inv = pl.reciprocal(jnp.sqrt(var) + jnp.float32(_EPS), approx=False)
    # Recompute (x - mean) in the store pass to keep the live f32 footprint low
    # for sub-f32 inputs (instead of holding a full centered copy).
    o_ref[...] = ((xf - mean) * inv).astype(o_ref.dtype)


def _pick_tile_rows(num_rows, c, pack, max_block_elems, batch):
    """Rows-of-128-lanes tile for the aligned (B, C, R, 128) layout."""
    budget_rows = (max_block_elems // (c * 128)) // pack * pack
    cap = max(pack, budget_rows)
    if batch < 2 and num_rows >= 2 * pack:
        # Guarantee >= 2 grid steps so both v7x TensorCores get work.
        cap = min(cap, _round_up(pl.cdiv(num_rows, 2), pack))
    if num_rows <= cap:
        return num_rows                       # single full-extent tile
    # Prefer an exact divisor (no ragged/masked last store); else take the cap.
    for k in range(cap // pack, 0, -1):
        t = k * pack
        if num_rows % t == 0:
            return t
    return cap


def _pick_tile_hw(hw, c, pack, max_block_elems, batch):
    """Lane tile for the misaligned (B, C, HW) fallback layout."""
    c_eff = _round_up(c, pack)                # physical sublane rows per block
    budget = (max_block_elems // c_eff) // 128 * 128
    cap = max(128, budget)
    if batch < 2 and hw >= 256:
        cap = min(cap, _round_up(pl.cdiv(hw, 2), 128))
    if hw <= cap:
        return hw                             # single full-extent tile
    # Ragged last block gets a masked store; correct because the reduction is
    # over C, never across the HW tiling axis.
    return cap


def standard_norm(x_nchw):
    """Matches StandardNorm.forward on NCHW input: normalize over dim=1 (C)."""
    B, C, H, W = x_nchw.shape
    HW = H * W
    itemsize = jnp.dtype(x_nchw.dtype).itemsize
    pack = _sublane_pack(itemsize)

    # ~1M elements (~4 MiB f32-equivalent working set) per block.
    max_block_elems = 1 << 20

    if HW % 128 == 0:
        # Aligned path: (B, C, R, 128) — dense vregs on the last two dims.
        R = HW // 128
        x_in = x_nchw.reshape(B, C, R, 128)
        tile_r = _pick_tile_rows(R, C, pack, max_block_elems, B)
        grid = (B, pl.cdiv(R, tile_r))
        block = (1, C, tile_r, 128)
        index_map = lambda b, j: (b, 0, j, 0)
        phys_block_elems = C * _round_up(tile_r, pack) * 128
        logical_block_elems = C * tile_r * 128
    else:
        # Misaligned HW fallback: tile HW directly (multiple-of-128 lanes).
        x_in = x_nchw.reshape(B, C, HW)
        tile_hw = _pick_tile_hw(HW, C, pack, max_block_elems, B)
        grid = (B, pl.cdiv(HW, tile_hw))
        block = (1, C, tile_hw)
        index_map = lambda b, j: (b, 0, j)
        phys_block_elems = _round_up(C, pack) * _round_up(tile_hw, 128)
        logical_block_elems = C * tile_hw

    # VMEM budget: 2x-double-buffered in+out blocks + f32-temporary headroom,
    # clamped to [32 MiB, 56 MiB] (v7x physical VMEM is 64 MiB per TensorCore).
    buf_bytes = 4 * phys_block_elems * itemsize
    tmp_bytes = 3 * logical_block_elems * 4
    vmem_limit = int(max(32 << 20, min(56 << 20, buf_bytes + tmp_bytes + (4 << 20))))

    y = pl.pallas_call(
        _standard_norm_kernel,
        out_shape=jax.ShapeDtypeStruct(x_in.shape, x_nchw.dtype),
        grid_spec=pltpu.PrefetchScalarGridSpec(
            num_scalar_prefetch=0,
            grid=grid,
            in_specs=[pl.BlockSpec(block, index_map)],
            out_specs=pl.BlockSpec(block, index_map),
        ),
        compiler_params=pltpu.CompilerParams(
            dimension_semantics=("parallel", "parallel"),
            vmem_limit_bytes=vmem_limit,
        ),
        cost_estimate=pl.CostEstimate(
            flops=8 * B * C * HW,
            transcendentals=2 * B * HW,        # sqrt + reciprocal per column
            bytes_accessed=2 * B * C * HW * itemsize,
        ),
    )(x_in)
    return y.reshape(B, C, H, W)


def _reference(x):
    # Pure-JAX mirror of the torch module (unbiased std, eps added to std).
    mean = jnp.mean(x, axis=1, keepdims=True)
    xc = x - mean
    std = jnp.sqrt(jnp.sum(xc * xc, axis=1, keepdims=True) / (x.shape[1] - 1))
    return xc / (std + _EPS)


if __name__ == "__main__":
    key = jax.random.PRNGKey(0)

    # Aligned path (HW % 128 == 0), B > 1.
    x = jax.random.normal(key, (2, 4, 16, 16), dtype=jnp.float32)
    y = jax.jit(standard_norm)(x)
    jax.block_until_ready(y)
    assert jnp.allclose(y, _reference(x), atol=1e-5, rtol=1e-5), float(
        jnp.max(jnp.abs(y - _reference(x)))
    )

    # Misaligned-HW fallback path (HW % 128 != 0), B == 1.
    x2 = jax.random.normal(jax.random.PRNGKey(0), (1, 3, 5, 5), dtype=jnp.float32)
    y2 = jax.jit(standard_norm)(x2)
    jax.block_until_ready(y2)
    assert jnp.allclose(y2, _reference(x2), atol=1e-5, rtol=1e-5), float(
        jnp.max(jnp.abs(y2 - _reference(x2)))
    )

    print("KERNEL_OK")
</pallas_src>

<mosaic_0001>
module attributes {stable_mosaic.version = 11 : i64} {
  func.func @_standard_norm_kernel(%arg0: i32, %arg1: i32, %arg2: memref<1x4x2x128xf32, #tpu.memory_space<vmem>>, %arg3: memref<1x4x2x128xf32, #tpu.memory_space<vmem>>) attributes {dimension_semantics = [#tpu.dimension_semantics<parallel>, #tpu.dimension_semantics<parallel>], iteration_bounds = array<i64: 2, 1>, scalar_prefetch = 0 : i64, scratch_operands = 0 : i64, tpu.core_type = #tpu.core_type<tc>, window_params = [{transform_indices = @transform_0, window_bounds = array<i64: 1, 4, 2, 128>}, {transform_indices = @transform_1, window_bounds = array<i64: 1, 4, 2, 128>}]} {
    %c0 = arith.constant 0 : index
    %c0_0 = arith.constant 0 : index
    %c0_1 = arith.constant 0 : index
    %c0_2 = arith.constant 0 : index
    %0 = vector.load %arg2[%c0, %c0_0, %c0_1, %c0_2] : memref<1x4x2x128xf32, #tpu.memory_space<vmem>>, vector<1x4x2x128xf32>
    %cst = arith.constant dense<0.000000e+00> : vector<1x2x128xf32>
    %1 = vector.multi_reduction <add>, %0, %cst [1] : vector<1x4x2x128xf32> to vector<1x2x128xf32>
    %2 = vector.shape_cast %1 : vector<1x2x128xf32> to vector<1x1x2x128xf32>
    %cst_3 = arith.constant 4.000000e+00 : f32
    %3 = vector.broadcast %cst_3 : f32 to vector<1x1x2x128xf32>
    %4 = arith.divf %2, %3 : vector<1x1x2x128xf32>
    %5 = vector.broadcast %4 : vector<1x1x2x128xf32> to vector<1x4x2x128xf32>
    %6 = arith.subf %0, %5 : vector<1x4x2x128xf32>
    %7 = arith.mulf %6, %6 : vector<1x4x2x128xf32>
    %cst_4 = arith.constant dense<0.000000e+00> : vector<1x2x128xf32>
    %8 = vector.multi_reduction <add>, %7, %cst_4 [1] : vector<1x4x2x128xf32> to vector<1x2x128xf32>
    %9 = vector.shape_cast %8 : vector<1x2x128xf32> to vector<1x1x2x128xf32>
    %cst_5 = arith.constant 0.333333343 : f32
    %10 = vector.broadcast %cst_5 : f32 to vector<1x1x2x128xf32>
    %11 = arith.mulf %9, %10 : vector<1x1x2x128xf32>
    %12 = math.sqrt %11 : vector<1x1x2x128xf32>
    %cst_6 = arith.constant 2.000000e-12 : f32
    %13 = vector.broadcast %cst_6 : f32 to vector<1x1x2x128xf32>
    %14 = arith.addf %12, %13 : vector<1x1x2x128xf32>
    %15 = tpu.reciprocal %14 : vector<1x1x2x128xf32> -> vector<1x1x2x128xf32>
    %16 = vector.broadcast %4 : vector<1x1x2x128xf32> to vector<1x4x2x128xf32>
    %17 = arith.subf %0, %16 : vector<1x4x2x128xf32>
    %18 = vector.broadcast %15 : vector<1x1x2x128xf32> to vector<1x4x2x128xf32>
    %19 = arith.mulf %17, %18 : vector<1x4x2x128xf32>
    %c0_7 = arith.constant 0 : index
    %c0_8 = arith.constant 0 : index
    %c0_9 = arith.constant 0 : index
    %c0_10 = arith.constant 0 : index
    %20 = vector.load %arg3[%c0_7, %c0_8, %c0_9, %c0_10] : memref<1x4x2x128xf32, #tpu.memory_space<vmem>>, vector<1x4x2x128xf32>
    tpu.vector_store %arg3[%c0_7, %c0_8, %c0_9, %c0_10], %19 {strides = array<i32>} : memref<1x4x2x128xf32, #tpu.memory_space<vmem>>, vector<1x4x2x128xf32>,
    return
  }
  func.func @transform_0(%arg0: i32, %arg1: i32) -> (i32, i32, i32, i32) {
    %c0_i32 = arith.constant 0 : i32
    %c0_i32_0 = arith.constant 0 : i32
    %c0_i32_1 = arith.constant 0 : i32
    return %arg0, %c0_i32, %arg1, %c0_i32_0 : i32, i32, i32, i32
  }
  func.func @transform_1(%arg0: i32, %arg1: i32) -> (i32, i32, i32, i32) {
    %c0_i32 = arith.constant 0 : i32
    %c0_i32_0 = arith.constant 0 : i32
    %c0_i32_1 = arith.constant 0 : i32
    return %arg0, %c0_i32, %arg1, %c0_i32_0 : i32, i32, i32, i32
  }
}

</mosaic_0001>

<llo_original>
// kernel: standard_norm.1
$region0: #{standard_norm.1}
  #allocation0 [shape = 'u32[]', space=smem, size = 0x4, offset = 0x4, fixed_abs, tag = 'smem constant byte address 0x4 - core index']
  #allocation1 [shape = 'u32[144,128]{1,0:T(1,128)}', space=vmem, size = 0x12000, scoped, tag = 'internal scratch']
  %s0 = inlined_call_operand.vmem [shape: f32[2,4,2,128], index: 0, kind: input, shape index: {}]
  %s1 = inlined_call_operand.vmem [shape: f32[2,4,2,128], index: 1, kind: output, shape index: {}]
  %s2 = sld [smem:[#allocation0]]
  $region37: #{standard_norm.1} parent=0
    _
  %s4 = ssub.s32 1, %s2
  %s5 = scalar_select 0, %s4, %s2
  loop: start=0, step=1, limit=4
  $region2: #{standard_norm.1} parent=0 // loop_pre_header
    _
  $region3: #{standard_norm.1} parent=0 // loop_header
    %s7 = sphi 0, %s11
    %p8 = scmp.ge.s32.totalorder %s7, 4
    %s14 = sphi 0, %s26
    %s15 = sphi 0, %s22
    %s16 = sphi 0, %s14
    %s17 = sphi 0, %s15
    %s18 = sphi 0, %s16
    %s19 = sphi 0, %s17
    %s31 = sphi 0, %s33
    %s34 = sphi 0, %s31
    %s35 = sphi 0, %s34
    %s51 = sphi 0, %s35
    %s59 = sphi 0, %s61
    %s62 = sphi 0, %s59
    %s63 = sphi 0, %s62
    %s79 = sphi 0, %s63
  $region4: #{standard_norm.1} parent=0 // loop_header_branch
    %10 = sbr.rel (%p8) target = $region8
  $region5: #{standard_norm.1} parent=0 // loop_body
    %s12 = ssub.s32 %s7, 1
    %s13 = ssub.s32 %s7, 2
    %s20 = sadd.s32 1, %s15
    %p21 = scmp.ge.s32.totalorder %s20, 1
    %s22 = scalar_select %p21, 0, %s20
    %s23 = sadd.s32 1, %s14
    %s24 = scalar_select %p21, %s23, %s14
    %p25 = scmp.ge.s32.totalorder %s24, 2
    %s26 = scalar_select %p25, 0, %s24
    %s27 = ssub.s32 %s14, %s26
    %s28 = ssub.s32 %s15, %s22
    %s29 = sor.u32 %s27, %s28
    %p30 = scmp.eq.s32.totalorder %s29, 0
    %s32 = sadd.s32 %s31, 1
    %s33 = scalar_select %p30, %s31, %s32
    %p36 = pneg %p30
    %p37 = scmp.eq.s32.totalorder %s7, 1
    %p38 = por %p36, %p37
    %p39 = scmp.ne.s32.totalorder %s31, %s34
    %p40 = scmp.eq.s32.totalorder %s7, 0
    %p41 = por %p39, %p40
    %p42 = scmp.ne.s32.totalorder %s31, %s34
    %p43 = scmp.eq.s32.totalorder %s12, 1
    %p44 = por %p42, %p43
    %p45 = scmp.ne.s32.totalorder %s34, %s35
    %p46 = scmp.eq.s32.totalorder %s12, 0
    %p47 = por %p45, %p46
    %p48 = scmp.ne.s32.totalorder %s34, %s35
    %p49 = scmp.eq.s32.totalorder %s13, 1
    %p50 = por %p48, %p49
    %p52 = scmp.ne.s32.totalorder %s35, %s51
    %p53 = scmp.eq.s32.totalorder %s13, 0
    %p54 = por %p52, %p53
    %s55 = ssub.s32 %s14, %s26
    %s56 = ssub.s32 %s15, %s22
    %s57 = sor.u32 %s55, %s56
    %p58 = scmp.eq.s32.totalorder %s57, 0
    %s60 = sadd.s32 %s59, 1
    %s61 = scalar_select %p58, %s59, %s60
    %p64 = pneg %p58
    %p65 = scmp.eq.s32.totalorder %s7, 1
    %p66 = por %p64, %p65
    %p67 = scmp.ne.s32.totalorder %s59, %s62
    %p68 = scmp.eq.s32.totalorder %s7, 0
    %p69 = por %p67, %p68
    %p70 = scmp.ne.s32.totalorder %s59, %s62
    %p71 = scmp.eq.s32.totalorder %s12, 1
    %p72 = por %p70, %p71
    %p73 = scmp.ne.s32.totalorder %s62, %s63
    %p74 = scmp.eq.s32.totalorder %s12, 0
    %p75 = por %p73, %p74
    %p76 = scmp.ne.s32.totalorder %s62, %s63
    %p77 = scmp.eq.s32.totalorder %s13, 1
    %p78 = por %p76, %p77
    %p80 = scmp.ne.s32.totalorder %s63, %s79
    %p81 = scmp.eq.s32.totalorder %s13, 0
    %p82 = por %p80, %p81
    %p83 = scmp.le.s32.totalorder 1, %s7
    %p84 = scmp.lt.s32.totalorder %s7, 3
    %p85 = pnand %p83, %p84
    %p86 = pneg %p85
    // Predicated region
    $region9: #{standard_norm.1} parent=5 // pred_check
      _
    $region10: #{standard_norm.1} parent=5 // pred_check_branch
      %88 = sbr.rel (%p85) target = $region12
    $region11: #{standard_norm.1} parent=5 // pred_region
      %s89 = ssub.s32 %s7, 1
    $region12: #{standard_norm.1} parent=5 // pred_fallthru
      _
    %p90 = scmp.lt.s32.totalorder %s7, 2
    // Predicated region
    $region13: #{standard_norm.1} parent=5 // pred_check
      %p91 = pneg %p90
    $region14: #{standard_norm.1} parent=5 // pred_check_branch
      %93 = sbr.rel (%p91) target = $region16
    $region15: #{standard_norm.1} parent=5 // pred_region
      // Predicated region
      $region17: #{standard_norm.1} parent=15 // pred_check
        %p94 = pneg %p41
      $region18: #{standard_norm.1} parent=15 // pred_check_branch
        %96 = sbr.rel (%p94) target = $region20
      $region19: #{standard_norm.1} parent=15 // pred_region
        %p97 = scmp.lt.s32.totalorder %s14, 1
        %s98 = scalar_select %p97, %s14, 1
        %p99 = scmp.lt.s32.totalorder %s15, 0
        %s100 = scalar_select %p99, %s15, 0
        %s101 = smul.addr %s98, 4
        %s102 = sadd.s32 %s100, %s101
        %s103 = smul.addr %s102, 2
        %s104 = scalar_lea.vmem %s0, %s103
      $region20: #{standard_norm.1} parent=15 // pred_fallthru
        _
    $region16: #{standard_norm.1} parent=5 // pred_fallthru
      _
    %p105 = scmp.le.s32.totalorder 1, %s7
    %p106 = scmp.lt.s32.totalorder %s7, 3
    %p107 = pnand %p105, %p106
    %p108 = pneg %p107
    // Predicated region
    $region21: #{standard_norm.1} parent=5 // pred_check
      _
    $region22: #{standard_norm.1} parent=5 // pred_check_branch
      %110 = sbr.rel (%p107) target = $region24
    $region23: #{standard_norm.1} parent=5 // pred_region
      %s111 = ssub.s32 %s7, 1
      %p112 = scmp.lt.s32.totalorder %s16, 1
      %s113 = scalar_select %p112, %s16, 1
      %p114 = scmp.lt.s32.totalorder %s17, 0
      %s115 = scalar_select %p114, %s17, 0
      %s116 = smul.addr %s113, 4
      %s117 = sadd.s32 %s115, %s116
      %s118 = smul.addr %s117, 2
      %s119 = scalar_lea.vmem %s0, %s118
      %p120 = pneg %p47
      %p121 = pneg %p44
      %p122 = pneg %p75
      %p123 = pneg %p72
      %p124 = scmp.lt.s32.totalorder %s16, 1
      %s125 = scalar_select %p124, %s16, 1
      %p126 = scmp.lt.s32.totalorder %s17, 0
      %s127 = scalar_select %p126, %s17, 0
      %s128 = smul.addr %s125, 4
      %s129 = sadd.s32 %s127, %s128
      %s130 = smul.addr %s129, 2
      %s131 = scalar_lea.vmem %s1, %s130
      %p132 = scmp.lt.s32.totalorder %s16, 1
      %s133 = scalar_select %p132, %s16, 1
      %p134 = scmp.lt.s32.totalorder %s17, 0
      %s135 = scalar_select %p134, %s17, 0
      %s136 = smul.addr %s133, 4
      %s137 = sadd.s32 %s135, %s136
      %s138 = smul.addr %s137, 2
      %s139 = scalar_lea.vmem %s0, %s138
      %p140 = scmp.lt.s32.totalorder %s16, 1
      %s141 = scalar_select %p140, %s16, 1
      %p142 = scmp.lt.s32.totalorder %s17, 0
      %s143 = scalar_select %p142, %s17, 0
      %s144 = smul.addr %s141, 4
      %s145 = sadd.s32 %s143, %s144
      %s146 = smul.addr %s145, 2
      %s147 = scalar_lea.vmem %s1, %s146
      %v148 = vld [vmem:[%s139] sm:$0x3]
      %v149 = vld [vmem:[%s139 + $0x2] sm:$0x3]
      %v150 = vld [vmem:[%s139 + $0x4] sm:$0x3]
      %v151 = vld [vmem:[%s139 + $0x6] sm:$0x3]
      %vm152 = vcmask 1041408
      %v153 = vsel %vm152, %v148, 0.0
      %v154 = vsel %vm152, %v149, 0.0
      %v155 = vadd.f32 %v153, %v154
      %v156 = vsel %vm152, %v150, 0.0
      %v157 = vadd.f32 %v155, %v156
      %v158 = vsel %vm152, %v151, 0.0
      %v159 = vadd.f32 %v157, %v158
      %v160 = vrcp.pop 4.0
      %v161 = vmul.f32 %v159, %v160
      %v162 = vsub.f32 %v148, %v161
      %v163 = vsub.f32 %v149, %v161
      %v164 = vsub.f32 %v150, %v161
      %v165 = vsub.f32 %v151, %v161
      %v166 = vmul.f32 %v162, %v162
      %v167 = vmul.f32 %v163, %v163
      %v168 = vmul.f32 %v164, %v164
      %v169 = vmul.f32 %v165, %v165
      %v170 = vsel %vm152, %v166, 0.0
      %v171 = vsel %vm152, %v167, 0.0
      %v172 = vadd.f32 %v170, %v171
      %v173 = vsel %vm152, %v168, 0.0
      %v174 = vadd.f32 %v172, %v173
      %v175 = vsel %vm152, %v169, 0.0
      %v176 = vadd.f32 %v174, %v175
      %v177 = vmul.f32 %v176, 0.33333334
      %v178 = vrsqrt.pop %v177
      %v179 = vmul.f32 %v177, %v178
      %vm180 = vcmp.eq.f32.partialorder %v177, inf
      %v181 = vsel %vm180, %v177, %v179
      %vm182 = vcmp.eq.f32.partialorder %v177, 0.0
      %v183 = vand.u32 %v177, 2147483648
      %v184 = vsel %vm182, %v183, %v181
      %v185 = vadd.f32 %v184, 2e-12
      %v186 = vrcp.pop %v185
      %v187 = vmul.f32 %v162, %v186
      %v188 = vmul.f32 %v163, %v186
      %v189 = vmul.f32 %v164, %v186
      %v190 = vmul.f32 %v165, %v186
      %191 = vst [vmem:[%s147] sm:$0x3] %v187
      %192 = vst [vmem:[%s147 + $0x2] sm:$0x3] %v188
      %193 = vst [vmem:[%s147 + $0x4] sm:$0x3] %v189
      %194 = vst [vmem:[%s147 + $0x6] sm:$0x3] %v190
      %p195 = scmp.lt.s32.totalorder %s16, 1
      %s196 = scalar_select %p195, %s16, 1
      %p197 = scmp.lt.s32.totalorder %s17, 0
      %s198 = scalar_select %p197, %s17, 0
      %s199 = smul.addr %s196, 4
      %s200 = sadd.s32 %s198, %s199
      %s201 = smul.addr %s200, 2
      %s202 = scalar_lea.vmem %s1, %s201
      // Predicated region
      $region25: #{standard_norm.1} parent=23 // pred_check
        %p203 = pneg %p72
      $region26: #{standard_norm.1} parent=23 // pred_check_branch
        %205 = sbr.rel (%p203) target = $region28
      $region27: #{standard_norm.1} parent=23 // pred_region
        _
      $region28: #{standard_norm.1} parent=23 // pred_fallthru
        _
    $region24: #{standard_norm.1} parent=5 // pred_fallthru
      _
    %p206 = scmp.le.s32.totalorder 2, %s7
    // Predicated region
    $region29: #{standard_norm.1} parent=5 // pred_check
      %p207 = pneg %p206
    $region30: #{standard_norm.1} parent=5 // pred_check_branch
      %209 = sbr.rel (%p207) target = $region32
    $region31: #{standard_norm.1} parent=5 // pred_region
      %s210 = ssub.s32 %s7, 2
      // Predicated region
      $region33: #{standard_norm.1} parent=31 // pred_check
        %p211 = pneg %p78
      $region34: #{standard_norm.1} parent=31 // pred_check_branch
        %213 = sbr.rel (%p211) target = $region36
      $region35: #{standard_norm.1} parent=31 // pred_region
        %p214 = scmp.lt.s32.totalorder %s18, 1
        %s215 = scalar_select %p214, %s18, 1
        %p216 = scmp.lt.s32.totalorder %s19, 0
        %s217 = scalar_select %p216, %s19, 0
        %s218 = smul.addr %s215, 4
        %s219 = sadd.s32 %s217, %s218
        %s220 = smul.addr %s219, 2
        %s221 = scalar_lea.vmem %s1, %s220
      $region36: #{standard_norm.1} parent=31 // pred_fallthru
        _
    $region32: #{standard_norm.1} parent=5 // pred_fallthru
      _
  $region6: #{standard_norm.1} parent=0 // loop_footer
    %s11 = sadd.s32 1, %s7
  $region7: #{standard_norm.1} parent=0 // loop_footer_branch
    %6 = sbr.rel target = $region3
  $region8: #{standard_norm.1} parent=0 // loop_exit
    _

</llo_original>
